<compile_context>
chip_gen: v5e
topology: v5e:2x2
jax: 0.10.0
libtpu: 0.0.40
codegen_flags: <defaults>
</compile_context>

<pallas_src>
import functools

import jax
import jax.numpy as jnp
from jax.experimental import pallas as pl
from jax.experimental.pallas import tpu as pltpu

SUBLANE = 8


def _round_up(x, m):
    return (x + m - 1) // m * m


def mlp_kernel(x_ref, w1_ref, b1_ref, w2_ref, b2_ref, o_ref):
    # Two MXU matmuls (bf16 operands, f32 accumulation) + fused, numerically
    # stable log_softmax.  Softmax reductions (XLU) and exp/log (EUP) co-issue
    # with the matmul/VALU work, so the fusion is essentially free.
    x = x_ref[...].astype(w1_ref.dtype)          # in-kernel f32 -> bf16 cast
    h = jnp.dot(x, w1_ref[...], preferred_element_type=jnp.float32) + b1_ref[...]
    h = jnp.maximum(h, 0.0)                      # ReLU (f32 on the VPU)
    logits = (
        jnp.dot(h.astype(w2_ref.dtype), w2_ref[...],
                preferred_element_type=jnp.float32)
        + b2_ref[...]
    )
    m = jnp.max(logits, axis=-1, keepdims=True)
    shifted = logits - m
    lse = jnp.log(jnp.sum(jnp.exp(shifted), axis=-1, keepdims=True))
    o_ref[...] = (shifted - lse).astype(o_ref.dtype)


def prepare_params(w1, b1, w2, b2, compute_dtype=jnp.bfloat16):
    """One-time parameter prep (hoisted out of the per-call forward).

    w1: (F, H); b1: (H,); w2: (H, C); b2: (C,)  — weights already laid out as
    (in, out), i.e. torch weight.T, so the kernel computes x @ W.
    """
    return (
        w1.astype(compute_dtype),
        b1.reshape(1, -1).astype(jnp.float32),
        w2.astype(compute_dtype),
        b2.reshape(1, -1).astype(jnp.float32),
    )


@functools.partial(jax.jit, static_argnames=("tile_n",))
def mlp_forward(x, params, *, tile_n=512):
    """Eval-mode MLP forward.  x: (N, F) f32 -> (N, C) f32 log-probabilities."""
    w1p, b1p, w2p, b2p = params
    n, f = x.shape
    hidden = w1p.shape[1]
    num_classes = w2p.shape[1]

    # Row tile: multiple of 8 sublanes, as large as the batch allows (per-step
    # overhead ~0.35us dominates small tiles).  For reasonably sized batches,
    # keep >= 2 grid steps so ("parallel",) can split rows across v7x's 2 TCs.
    n_sub = _round_up(n, SUBLANE)
    tn = max(SUBLANE, min(tile_n, n_sub))
    if n_sub >= 256:
        tn = min(tn, _round_up(pl.cdiv(n_sub, 2), SUBLANE))
    tn = _round_up(tn, SUBLANE)

    grid = (pl.cdiv(n, tn),)   # ragged last block is fine: log_softmax is
                               # strictly row-wise and OOB rows are dropped.

    flops = 2 * n * (f * hidden + hidden * num_classes)
    bytes_accessed = (
        x.size * x.dtype.itemsize
        + w1p.size * w1p.dtype.itemsize
        + b1p.size * b1p.dtype.itemsize
        + w2p.size * w2p.dtype.itemsize
        + b2p.size * b2p.dtype.itemsize
        + n * num_classes * 4
    )
    cost = pl.CostEstimate(
        flops=flops,
        transcendentals=n * (num_classes + 1),   # exp per logit + log per row
        bytes_accessed=bytes_accessed,
    )

    return pl.pallas_call(
        mlp_kernel,
        out_shape=jax.ShapeDtypeStruct((n, num_classes), jnp.float32),
        grid=grid,
        in_specs=[
            pl.BlockSpec((tn, f), lambda i: (i, 0)),                # x: row-tiled
            pl.BlockSpec((f, hidden), lambda i: (0, 0)),            # W1 resident
            pl.BlockSpec((1, hidden), lambda i: (0, 0)),            # b1 resident
            pl.BlockSpec((hidden, num_classes), lambda i: (0, 0)),  # W2 resident
            pl.BlockSpec((1, num_classes), lambda i: (0, 0)),       # b2 resident
        ],
        out_specs=pl.BlockSpec((tn, num_classes), lambda i: (i, 0)),
        compiler_params=pltpu.CompilerParams(
            dimension_semantics=("parallel",),   # v7x: rows split across 2 TCs
        ),
        cost_estimate=cost,
    )(x, w1p, b1p, w2p, b2p)


def xavier_uniform(key, fan_in, fan_out, dtype=jnp.float32):
    # Matches nn.init.xavier_uniform_ on a (fan_out, fan_in) torch weight;
    # returned already transposed to (fan_in, fan_out) for the kernel.
    bound = jnp.sqrt(6.0 / (fan_in + fan_out))
    return jax.random.uniform(
        key, (fan_in, fan_out), minval=-bound, maxval=bound, dtype=dtype
    )


if __name__ == "__main__":
    num_features = 32
    hidden_dim = 32
    num_classes = 16
    batch = 256          # gives a 2-step row grid after the v7x >=2-step clamp

    key = jax.random.PRNGKey(0)
    kx, k1, k2 = jax.random.split(key, 3)

    x = jax.random.normal(kx, (batch, num_features), dtype=jnp.float32)
    w1 = xavier_uniform(k1, num_features, hidden_dim)    # (F, H)
    b1 = jnp.zeros((hidden_dim,), dtype=jnp.float32)     # zero-init bias
    w2 = xavier_uniform(k2, hidden_dim, num_classes)     # (H, C)
    b2 = jnp.zeros((num_classes,), dtype=jnp.float32)

    params = prepare_params(w1, b1, w2, b2)              # one-time weight prep
    out = mlp_forward(x, params, tile_n=512)
    jax.block_until_ready(out)

    # Reference 1: same bf16-operand / f32-accumulation recipe (tight check).
    cd = jnp.bfloat16
    h_ref = jnp.maximum(
        jnp.dot(x.astype(cd), w1.astype(cd), preferred_element_type=jnp.float32) + b1,
        0.0,
    )
    logits_ref = (
        jnp.dot(h_ref.astype(cd), w2.astype(cd), preferred_element_type=jnp.float32)
        + b2
    )
    ref = jax.nn.log_softmax(logits_ref, axis=1)

    assert out.shape == (batch, num_classes)
    err = float(jnp.max(jnp.abs(out - ref)))
    assert jnp.allclose(out, ref, atol=1e-4, rtol=1e-4), f"max abs err = {err}"

    # Reference 2: full-f32 (PyTorch-default) recipe, loose tolerance — guards
    # overall forward-pass semantics despite bf16 matmul operands.
    ref32 = jax.nn.log_softmax(jnp.maximum(x @ w1 + b1, 0.0) @ w2 + b2, axis=1)
    assert jnp.allclose(out, ref32, atol=1e-1, rtol=0.0)

    print("KERNEL_OK")
</pallas_src>

<mosaic_0001>
module attributes {stable_mosaic.version = 11 : i64} {
  func.func @mlp_kernel(%arg0: i32, %arg1: memref<128x32xf32, #tpu.memory_space<vmem>>, %arg2: memref<32x32xbf16, #tpu.memory_space<vmem>>, %arg3: memref<1x32xf32, #tpu.memory_space<vmem>>, %arg4: memref<32x16xbf16, #tpu.memory_space<vmem>>, %arg5: memref<1x16xf32, #tpu.memory_space<vmem>>, %arg6: memref<128x16xf32, #tpu.memory_space<vmem>>) attributes {dimension_semantics = [#tpu.dimension_semantics<parallel>], iteration_bounds = array<i64: 2>, scalar_prefetch = 0 : i64, scratch_operands = 0 : i64, tpu.core_type = #tpu.core_type<tc>, window_params = [{transform_indices = @transform_0, window_bounds = array<i64: 128, 32>}, {pipeline_mode = #tpu.pipeline_mode<synchronous>, transform_indices = @transform_1, window_bounds = array<i64: 32, 32>}, {pipeline_mode = #tpu.pipeline_mode<synchronous>, transform_indices = @transform_2, window_bounds = array<i64: 1, 32>}, {pipeline_mode = #tpu.pipeline_mode<synchronous>, transform_indices = @transform_3, window_bounds = array<i64: 32, 16>}, {pipeline_mode = #tpu.pipeline_mode<synchronous>, transform_indices = @transform_4, window_bounds = array<i64: 1, 16>}, {transform_indices = @transform_5, window_bounds = array<i64: 128, 16>}]} {
    %c0 = arith.constant 0 : index
    %c0_0 = arith.constant 0 : index
    %0 = vector.load %arg1[%c0, %c0_0] : memref<128x32xf32, #tpu.memory_space<vmem>>, vector<128x32xf32>
    %1 = arith.truncf %0 : vector<128x32xf32> to vector<128x32xbf16>
    %c0_1 = arith.constant 0 : index
    %c0_2 = arith.constant 0 : index
    %2 = vector.load %arg2[%c0_1, %c0_2] : memref<32x32xbf16, #tpu.memory_space<vmem>>, vector<32x32xbf16>
    %cst = arith.constant dense<0.000000e+00> : vector<128x32xf32>
    %3 = tpu.matmul %1, %2, %cst {dimension_numbers = #tpu.dot_dimension_numbers<[1], [0], [0], [1], [0, 0, 1, 1], [], []>} : vector<128x32xbf16>, vector<32x32xbf16>, vector<128x32xf32> -> vector<128x32xf32>
    %c0_3 = arith.constant 0 : index
    %c0_4 = arith.constant 0 : index
    %4 = vector.load %arg3[%c0_3, %c0_4] : memref<1x32xf32, #tpu.memory_space<vmem>>, vector<1x32xf32>
    %5 = vector.broadcast %4 : vector<1x32xf32> to vector<128x32xf32>
    %6 = arith.addf %3, %5 : vector<128x32xf32>
    %cst_5 = arith.constant 0.000000e+00 : f32
    %7 = vector.broadcast %cst_5 : f32 to vector<128x32xf32>
    %8 = arith.maximumf %6, %7 : vector<128x32xf32>
    %9 = arith.truncf %8 : vector<128x32xf32> to vector<128x32xbf16>
    %c0_6 = arith.constant 0 : index
    %c0_7 = arith.constant 0 : index
    %10 = vector.load %arg4[%c0_6, %c0_7] : memref<32x16xbf16, #tpu.memory_space<vmem>>, vector<32x16xbf16>
    %cst_8 = arith.constant dense<0.000000e+00> : vector<128x16xf32>
    %11 = tpu.matmul %9, %10, %cst_8 {dimension_numbers = #tpu.dot_dimension_numbers<[1], [0], [0], [1], [0, 0, 1, 1], [], []>} : vector<128x32xbf16>, vector<32x16xbf16>, vector<128x16xf32> -> vector<128x16xf32>
    %c0_9 = arith.constant 0 : index
    %c0_10 = arith.constant 0 : index
    %12 = vector.load %arg5[%c0_9, %c0_10] : memref<1x16xf32, #tpu.memory_space<vmem>>, vector<1x16xf32>
    %13 = vector.broadcast %12 : vector<1x16xf32> to vector<128x16xf32>
    %14 = arith.addf %11, %13 : vector<128x16xf32>
    %cst_11 = arith.constant dense<0xFF800000> : vector<128xf32>
    %15 = vector.multi_reduction <maximumf>, %14, %cst_11 [1] : vector<128x16xf32> to vector<128xf32>
    %16 = vector.shape_cast %15 : vector<128xf32> to vector<128x1xf32>
    %17 = vector.broadcast %16 : vector<128x1xf32> to vector<128x16xf32>
    %18 = arith.subf %14, %17 : vector<128x16xf32>
    %19 = math.exp %18 : vector<128x16xf32>
    %cst_12 = arith.constant dense<0.000000e+00> : vector<128xf32>
    %20 = vector.multi_reduction <add>, %19, %cst_12 [1] : vector<128x16xf32> to vector<128xf32>
    %21 = vector.shape_cast %20 : vector<128xf32> to vector<128x1xf32>
    %22 = math.log %21 : vector<128x1xf32>
    %23 = vector.broadcast %22 : vector<128x1xf32> to vector<128x16xf32>
    %24 = arith.subf %18, %23 : vector<128x16xf32>
    %c0_13 = arith.constant 0 : index
    %c0_14 = arith.constant 0 : index
    %25 = vector.load %arg6[%c0_13, %c0_14] : memref<128x16xf32, #tpu.memory_space<vmem>>, vector<128x16xf32>
    tpu.vector_store %arg6[%c0_13, %c0_14], %24 {strides = array<i32>} : memref<128x16xf32, #tpu.memory_space<vmem>>, vector<128x16xf32>,
    return
  }
  func.func @transform_0(%arg0: i32) -> (i32, i32) {
    %c0_i32 = arith.constant 0 : i32
    %c0_i32_0 = arith.constant 0 : i32
    return %arg0, %c0_i32 : i32, i32
  }
  func.func @transform_1(%arg0: i32) -> (i32, i32) {
    %c0_i32 = arith.constant 0 : i32
    %c0_i32_0 = arith.constant 0 : i32
    %c0_i32_1 = arith.constant 0 : i32
    return %c0_i32, %c0_i32_0 : i32, i32
  }
  func.func @transform_2(%arg0: i32) -> (i32, i32) {
    %c0_i32 = arith.constant 0 : i32
    %c0_i32_0 = arith.constant 0 : i32
    %c0_i32_1 = arith.constant 0 : i32
    return %c0_i32, %c0_i32_0 : i32, i32
  }
  func.func @transform_3(%arg0: i32) -> (i32, i32) {
    %c0_i32 = arith.constant 0 : i32
    %c0_i32_0 = arith.constant 0 : i32
    %c0_i32_1 = arith.constant 0 : i32
    return %c0_i32, %c0_i32_0 : i32, i32
  }
  func.func @transform_4(%arg0: i32) -> (i32, i32) {
    %c0_i32 = arith.constant 0 : i32
    %c0_i32_0 = arith.constant 0 : i32
    %c0_i32_1 = arith.constant 0 : i32
    return %c0_i32, %c0_i32_0 : i32, i32
  }
  func.func @transform_5(%arg0: i32) -> (i32, i32) {
    %c0_i32 = arith.constant 0 : i32
    %c0_i32_0 = arith.constant 0 : i32
    return %arg0, %c0_i32 : i32, i32
  }
}

</mosaic_0001>

<llo_original>
// kernel: mlp_forward.1
$region0: #{mlp_forward.1}
  #allocation0 [shape = 'u32[]', space=smem, size = 0x4, offset = 0x4, fixed_abs, tag = 'smem constant byte address 0x4 - core index']
  #allocation1 [shape = 'u32[72,128]{1,0:T(1,128)}', space=vmem, size = 0x9000, scoped, tag = 'internal scratch']
  %s0 = inlined_call_operand.vmem [shape: f32[256,32], index: 0, kind: input, shape index: {}]
  %s1 = inlined_call_operand.vmem [shape: bf16[32,32], index: 1, kind: input, shape index: {}]
  %s2 = inlined_call_operand.vmem [shape: f32[1,32], index: 2, kind: input, shape index: {}]
  %s3 = inlined_call_operand.vmem [shape: bf16[32,16], index: 3, kind: input, shape index: {}]
  %s4 = inlined_call_operand.vmem [shape: f32[1,16], index: 4, kind: input, shape index: {}]
  %s5 = inlined_call_operand.vmem [shape: f32[256,16], index: 5, kind: output, shape index: {}]
  %s6 = sld [smem:[#allocation0]]
  $region53: #{mlp_forward.1} parent=0
    _
  %s8 = ssub.s32 1, %s6
  %s9 = scalar_select 0, %s8, %s6
  loop: start=0, step=1, limit=4
  $region2: #{mlp_forward.1} parent=0 // loop_pre_header
    _
  $region3: #{mlp_forward.1} parent=0 // loop_header
    %s11 = sphi 0, %s15
    %p12 = scmp.ge.s32.totalorder %s11, 4
    %s21 = sphi 0, %s23
    %s24 = sphi 0, %s21
    %s25 = sphi 0, %s24
    %s41 = sphi 0, %s25
    %s45 = sphi 0, %s45
    %s47 = sphi 0, %s45
    %s48 = sphi 0, %s47
    %s62 = sphi 0, %s48
    %s66 = sphi 0, %s66
    %s68 = sphi 0, %s66
    %s69 = sphi 0, %s68
    %s83 = sphi 0, %s69
    %s87 = sphi 0, %s87
    %s89 = sphi 0, %s87
    %s90 = sphi 0, %s89
    %s104 = sphi 0, %s90
    %s108 = sphi 0, %s108
    %s110 = sphi 0, %s108
    %s111 = sphi 0, %s110
    %s125 = sphi 0, %s111
    %s131 = sphi 0, %s133
    %s134 = sphi 0, %s131
    %s135 = sphi 0, %s134
    %s151 = sphi 0, %s135
  $region4: #{mlp_forward.1} parent=0 // loop_header_branch
    %14 = sbr.rel (%p12) target = $region8
  $region5: #{mlp_forward.1} parent=0 // loop_body
    %s16 = ssub.s32 %s11, 1
    %s17 = ssub.s32 %s11, 2
    %s18 = sadd.s32 %s11, 1
    %s19 = ssub.s32 %s11, %s18
    %p20 = scmp.eq.s32.totalorder %s19, 0
    %s22 = sadd.s32 %s21, 1
    %s23 = scalar_select %p20, %s21, %s22
    %p26 = pneg %p20
    %p27 = scmp.eq.s32.totalorder %s11, 1
    %p28 = por %p26, %p27
    %p29 = scmp.ne.s32.totalorder %s21, %s24
    %p30 = scmp.eq.s32.totalorder %s11, 0
    %p31 = por %p29, %p30
    %p32 = scmp.ne.s32.totalorder %s21, %s24
    %p33 = scmp.eq.s32.totalorder %s16, 1
    %p34 = por %p32, %p33
    %p35 = scmp.ne.s32.totalorder %s24, %s25
    %p36 = scmp.eq.s32.totalorder %s16, 0
    %p37 = por %p35, %p36
    %p38 = scmp.ne.s32.totalorder %s24, %s25
    %p39 = scmp.eq.s32.totalorder %s17, 1
    %p40 = por %p38, %p39
    %p42 = scmp.ne.s32.totalorder %s25, %s41
    %p43 = scmp.eq.s32.totalorder %s17, 0
    %p44 = por %p42, %p43
    %s46 = sadd.s32 %s45, 1
    %p49 = scmp.eq.s32.totalorder %s11, 1
    %p50 = scmp.ne.s32.totalorder %s45, %s47
    %p51 = scmp.eq.s32.totalorder %s11, 0
    %p52 = por %p50, %p51
    %p53 = scmp.ne.s32.totalorder %s45, %s47
    %p54 = scmp.eq.s32.totalorder %s16, 1
    %p55 = por %p53, %p54
    %p56 = scmp.ne.s32.totalorder %s47, %s48
    %p57 = scmp.eq.s32.totalorder %s16, 0
    %p58 = por %p56, %p57
    %p59 = scmp.ne.s32.totalorder %s47, %s48
    %p60 = scmp.eq.s32.totalorder %s17, 1
    %p61 = por %p59, %p60
    %p63 = scmp.ne.s32.totalorder %s48, %s62
    %p64 = scmp.eq.s32.totalorder %s17, 0
    %p65 = por %p63, %p64
    %s67 = sadd.s32 %s66, 1
    %p70 = scmp.eq.s32.totalorder %s11, 1
    %p71 = scmp.ne.s32.totalorder %s66, %s68
    %p72 = scmp.eq.s32.totalorder %s11, 0
    %p73 = por %p71, %p72
    %p74 = scmp.ne.s32.totalorder %s66, %s68
    %p75 = scmp.eq.s32.totalorder %s16, 1
    %p76 = por %p74, %p75
    %p77 = scmp.ne.s32.totalorder %s68, %s69
    %p78 = scmp.eq.s32.totalorder %s16, 0
    %p79 = por %p77, %p78
    %p80 = scmp.ne.s32.totalorder %s68, %s69
    %p81 = scmp.eq.s32.totalorder %s17, 1
    %p82 = por %p80, %p81
    %p84 = scmp.ne.s32.totalorder %s69, %s83
    %p85 = scmp.eq.s32.totalorder %s17, 0
    %p86 = por %p84, %p85
    %s88 = sadd.s32 %s87, 1
    %p91 = scmp.eq.s32.totalorder %s11, 1
    %p92 = scmp.ne.s32.totalorder %s87, %s89
    %p93 = scmp.eq.s32.totalorder %s11, 0
    %p94 = por %p92, %p93
    %p95 = scmp.ne.s32.totalorder %s87, %s89
    %p96 = scmp.eq.s32.totalorder %s16, 1
    %p97 = por %p95, %p96
    %p98 = scmp.ne.s32.totalorder %s89, %s90
    %p99 = scmp.eq.s32.totalorder %s16, 0
    %p100 = por %p98, %p99
    %p101 = scmp.ne.s32.totalorder %s89, %s90
    %p102 = scmp.eq.s32.totalorder %s17, 1
    %p103 = por %p101, %p102
    %p105 = scmp.ne.s32.totalorder %s90, %s104
    %p106 = scmp.eq.s32.totalorder %s17, 0
    %p107 = por %p105, %p106
    %s109 = sadd.s32 %s108, 1
    %p112 = scmp.eq.s32.totalorder %s11, 1
    %p113 = scmp.ne.s32.totalorder %s108, %s110
    %p114 = scmp.eq.s32.totalorder %s11, 0
    %p115 = por %p113, %p114
    %p116 = scmp.ne.s32.totalorder %s108, %s110
    %p117 = scmp.eq.s32.totalorder %s16, 1
    %p118 = por %p116, %p117
    %p119 = scmp.ne.s32.totalorder %s110, %s111
    %p120 = scmp.eq.s32.totalorder %s16, 0
    %p121 = por %p119, %p120
    %p122 = scmp.ne.s32.totalorder %s110, %s111
    %p123 = scmp.eq.s32.totalorder %s17, 1
    %p124 = por %p122, %p123
    %p126 = scmp.ne.s32.totalorder %s111, %s125
    %p127 = scmp.eq.s32.totalorder %s17, 0
    %p128 = por %p126, %p127
    %s129 = ssub.s32 %s11, %s18
    %p130 = scmp.eq.s32.totalorder %s129, 0
    %s132 = sadd.s32 %s131, 1
    %s133 = scalar_select %p130, %s131, %s132
    %p136 = pneg %p130
    %p137 = scmp.eq.s32.totalorder %s11, 1
    %p138 = por %p136, %p137
    %p139 = scmp.ne.s32.totalorder %s131, %s134
    %p140 = scmp.eq.s32.totalorder %s11, 0
    %p141 = por %p139, %p140
    %p142 = scmp.ne.s32.totalorder %s131, %s134
    %p143 = scmp.eq.s32.totalorder %s16, 1
    %p144 = por %p142, %p143
    %p145 = scmp.ne.s32.totalorder %s134, %s135
    %p146 = scmp.eq.s32.totalorder %s16, 0
    %p147 = por %p145, %p146
    %p148 = scmp.ne.s32.totalorder %s134, %s135
    %p149 = scmp.eq.s32.totalorder %s17, 1
    %p150 = por %p148, %p149
    %p152 = scmp.ne.s32.totalorder %s135, %s151
    %p153 = scmp.eq.s32.totalorder %s17, 0
    %p154 = por %p152, %p153
    %p155 = scmp.le.s32.totalorder 1, %s11
    %p156 = scmp.lt.s32.totalorder %s11, 3
    %p157 = pnand %p155, %p156
    %p158 = pneg %p157
    // Predicated region
    $region9: #{mlp_forward.1} parent=5 // pred_check
      _
    $region10: #{mlp_forward.1} parent=5 // pred_check_branch
      %160 = sbr.rel (%p157) target = $region12
    $region11: #{mlp_forward.1} parent=5 // pred_region
      %s161 = ssub.s32 %s11, 1
      // Predicated region
      $region13: #{mlp_forward.1} parent=11 // pred_check
        %p162 = pneg %p58
      $region14: #{mlp_forward.1} parent=11 // pred_check_branch
        %164 = sbr.rel (%p162) target = $region16
      $region15: #{mlp_forward.1} parent=11 // pred_region
        _
      $region16: #{mlp_forward.1} parent=11 // pred_fallthru
        _
      // Predicated region
      $region17: #{mlp_forward.1} parent=11 // pred_check
        %p165 = pneg %p79
      $region18: #{mlp_forward.1} parent=11 // pred_check_branch
        %167 = sbr.rel (%p165) target = $region20
      $region19: #{mlp_forward.1} parent=11 // pred_region
        _
      $region20: #{mlp_forward.1} parent=11 // pred_fallthru
        _
      // Predicated region
      $region21: #{mlp_forward.1} parent=11 // pred_check
        %p168 = pneg %p100
      $region22: #{mlp_forward.1} parent=11 // pred_check_branch
        %170 = sbr.rel (%p168) target = $region24
      $region23: #{mlp_forward.1} parent=11 // pred_region
        _
      $region24: #{mlp_forward.1} parent=11 // pred_fallthru
        _
      // Predicated region
      $region25: #{mlp_forward.1} parent=11 // pred_check
        %p171 = pneg %p121
      $region26: #{mlp_forward.1} parent=11 // pred_check_branch
        %173 = sbr.rel (%p171) target = $region28
      $region27: #{mlp_forward.1} parent=11 // pred_region
        _
      $region28: #{mlp_forward.1} parent=11 // pred_fallthru
        _
    $region12: #{mlp_forward.1} parent=5 // pred_fallthru
      _
    %p174 = scmp.lt.s32.totalorder %s11, 2
    // Predicated region
    $region29: #{mlp_forward.1} parent=5 // pred_check
      %p175 = pneg %p174
    $region30: #{mlp_forward.1} parent=5 // pred_check_branch
      %177 = sbr.rel (%p175) target = $region32
    $region31: #{mlp_forward.1} parent=5 // pred_region
      // Predicated region
      $region33: #{mlp_forward.1} parent=31 // pred_check
        %p178 = pneg %p31
      $region34: #{mlp_forward.1} parent=31 // pred_check_branch
        %180 = sbr.rel (%p178) target = $region36
      $region35: #{mlp_forward.1} parent=31 // pred_region
        %s181 = smul.u32 16, %s11
        %p182 = scmp.lt.s32.totalorder %s181, 31
        %s183 = scalar_select %p182, %s181, 31
        %s184 = smul.addr %s183, 8
        %s185 = scalar_lea.vmem %s0, %s184
        %s186 = smul.u32 16, %s11
      $region36: #{mlp_forward.1} parent=31 // pred_fallthru
        _
    $region32: #{mlp_forward.1} parent=5 // pred_fallthru
      _
    %p187 = scmp.le.s32.totalorder 1, %s11
    %p188 = scmp.lt.s32.totalorder %s11, 3
    %p189 = pnand %p187, %p188
    %p190 = pneg %p189
    // Predicated region
    $region37: #{mlp_forward.1} parent=5 // pred_check
      _
    $region38: #{mlp_forward.1} parent=5 // pred_check_branch
      %192 = sbr.rel (%p189) target = $region40
    $region39: #{mlp_forward.1} parent=5 // pred_region
      %s193 = ssub.s32 %s11, 1
      %s194 = smul.u32 16, %s16
      %p195 = scmp.lt.s32.totalorder %s194, 31
      %s196 = scalar_select %p195, %s194, 31
      %s197 = smul.addr %s196, 8
      %s198 = scalar_lea.vmem %s0, %s197
      %p199 = pneg %p37
      %p200 = pneg %p34
      %p201 = pneg %p58
      %p202 = pneg %p55
      %p203 = pneg %p79
      %p204 = pneg %p76
      %p205 = pneg %p100
      %p206 = pneg %p97
      %p207 = pneg %p121
      %p208 = pneg %p118
      %p209 = pneg %p147
      %p210 = pneg %p144
      %s211 = smul.u32 16, %s16
      %p212 = scmp.lt.s32.totalorder %s211, 31
      %s213 = scalar_select %p212, %s211, 31
      %s214 = smul.addr %s213, 8
      %s215 = scalar_lea.vmem %s5, %s214
      %s216 = smul.u32 16, %s16
      %p217 = scmp.lt.s32.totalorder %s216, 31
      %s218 = scalar_select %p217, %s216, 31
      %s219 = smul.addr %s218, 8
      %s220 = scalar_lea.vmem %s0, %s219
      %s221 = smul.u32 16, %s16
      %s222 = smul.u32 16, %s16
      %p223 = scmp.lt.s32.totalorder %s222, 31
      %s224 = scalar_select %p223, %s222, 31
      %s225 = smul.addr %s224, 8
      %s226 = scalar_lea.vmem %s5, %s225
      %s227 = smul.u32 16, %s16
      %v229 = vld [vmem:[%s220] sm:$0xff]
      %v230 = vld [vmem:[%s220 + $0x8] sm:$0xff]
      %v231 = vld [vmem:[%s220 + $0x10] sm:$0xff]
      %v232 = vld [vmem:[%s220 + $0x18] sm:$0xff]
      %v233 = vld [vmem:[%s220 + $0x20] sm:$0xff]
      %v234 = vld [vmem:[%s220 + $0x28] sm:$0xff]
      %v235 = vld [vmem:[%s220 + $0x30] sm:$0xff]
      %v236 = vld [vmem:[%s220 + $0x38] sm:$0xff]
      %v237 = vld [vmem:[%s220 + $0x40] sm:$0xff]
      %v238 = vld [vmem:[%s220 + $0x48] sm:$0xff]
      %v239 = vld [vmem:[%s220 + $0x50] sm:$0xff]
      %v240 = vld [vmem:[%s220 + $0x58] sm:$0xff]
      %v241 = vld [vmem:[%s220 + $0x60] sm:$0xff]
      %v242 = vld [vmem:[%s220 + $0x68] sm:$0xff]
      %v243 = vld [vmem:[%s220 + $0x70] sm:$0xff]
      %v244 = vld [vmem:[%s220 + $0x78] sm:$0xff]
      %v245 = vpack.c.bf16 %v230, %v229
      %v246 = vpack.c.bf16 %v232, %v231
      %v247 = vpack.c.bf16 %v234, %v233
      %v248 = vpack.c.bf16 %v236, %v235
      %v249 = vpack.c.bf16 %v238, %v237
      %v250 = vpack.c.bf16 %v240, %v239
      %v251 = vpack.c.bf16 %v242, %v241
      %v252 = vpack.c.bf16 %v244, %v243
      %v253 = vld [vmem:[%s1] sm:$0xf]
      %v254 = vld [vmem:[%s1 + $0x4] sm:$0xf]
      %v255 = vld [vmem:[%s1 + $0x8] sm:$0xf]
      %v256 = vld [vmem:[%s1 + $0xc] sm:$0xf]
      %v257 = vld [vmem:[%s2] sm:$0x1]
      %v259 = vperm.slane %v257, 0
      %v265 = vunpack.c.l.b16 %v253
      %v266 = vunpack.c.l.b16 %v254
      %v267 = vunpack.c.l.b16 %v255
      %v268 = vunpack.c.l.b16 %v256
      %v269 = vpack.c.b16 %v266, %v265
      %v270 = vpack.c.b16 %v268, %v267
      %vm273 = vcmask 261120
      %v275 = vsel %vm273, %v245, 0
      %v278 = vsel %vm273, %v246, 0
      %v281 = vsel %vm273, %v247, 0
      %v284 = vsel %vm273, %v248, 0
      %v287 = vsel %vm273, %v249, 0
      %v290 = vsel %vm273, %v250, 0
      %v293 = vsel %vm273, %v251, 0
      %v296 = vsel %vm273, %v252, 0
      %298 = vmatpush.bf16.msra.mxu0 0
      %299 = vmatpush.bf16.msra.mxu0 0
      %300 = vmatpush.bf16.msra.mxu0 0
      %301 = vmatpush.bf16.msra.mxu0 0
      %302 = vmatpush.bf16.msra.mxu0 0
      %303 = vmatpush.bf16.msra.mxu0 0
      %304 = vmatpush.bf16.msra.mxu0 %v270
      %305 = vmatpush.bf16.msra.mxu0 %v269
      %306 = vmatmul.bf16.gmra.mxu0 %v275
      %v307 = vpop.f32.mrf.mxu0
      %v308 = vadd.f32 %v259, %v307
      %v309 = vpop.f32.mrf.mxu0
      %v310 = vadd.f32 %v259, %v309
      %311 = vmatmul.bf16.gmra.mxu0 %v278
      %v312 = vpop.f32.mrf.mxu0
      %v313 = vadd.f32 %v259, %v312
      %v314 = vpop.f32.mrf.mxu0
      %v315 = vadd.f32 %v259, %v314
      %316 = vmatmul.bf16.gmra.mxu0 %v281
      %v317 = vpop.f32.mrf.mxu0
      %v318 = vadd.f32 %v259, %v317
      %v319 = vpop.f32.mrf.mxu0
      %v320 = vadd.f32 %v259, %v319
      %321 = vmatmul.bf16.gmra.mxu0 %v284
      %v322 = vpop.f32.mrf.mxu0
      %v323 = vadd.f32 %v259, %v322
      %v324 = vpop.f32.mrf.mxu0
      %v325 = vadd.f32 %v259, %v324
      %326 = vmatmul.bf16.gmra.mxu0 %v287
      %v327 = vpop.f32.mrf.mxu0
      %v328 = vadd.f32 %v259, %v327
      %v329 = vpop.f32.mrf.mxu0
      %v330 = vadd.f32 %v259, %v329
      %331 = vmatmul.bf16.gmra.mxu0 %v290
      %v332 = vpop.f32.mrf.mxu0
      %v333 = vadd.f32 %v259, %v332
      %v334 = vpop.f32.mrf.mxu0
      %v335 = vadd.f32 %v259, %v334
      %336 = vmatmul.bf16.gmra.mxu0 %v293
      %v337 = vpop.f32.mrf.mxu0
      %v338 = vadd.f32 %v259, %v337
      %v339 = vpop.f32.mrf.mxu0
      %v340 = vadd.f32 %v259, %v339
      %341 = vmatmul.bf16.gmra.mxu0 %v296
      %v342 = vpop.f32.mrf.mxu0
      %v343 = vadd.f32 %v259, %v342
      %v344 = vpop.f32.mrf.mxu0
      %v345 = vadd.f32 %v259, %v344
      %346 = vdwg.mxu0
      %v347 = vmax.f32 %v308, 0.0
      %v348 = vmax.f32 %v310, 0.0
      %v349 = vmax.f32 %v313, 0.0
      %v350 = vmax.f32 %v315, 0.0
      %v351 = vmax.f32 %v318, 0.0
      %v352 = vmax.f32 %v320, 0.0
      %v353 = vmax.f32 %v323, 0.0
      %v354 = vmax.f32 %v325, 0.0
      %v355 = vmax.f32 %v328, 0.0
      %v356 = vmax.f32 %v330, 0.0
      %v357 = vmax.f32 %v333, 0.0
      %v358 = vmax.f32 %v335, 0.0
      %v359 = vmax.f32 %v338, 0.0
      %v360 = vmax.f32 %v340, 0.0
      %v361 = vmax.f32 %v343, 0.0
      %v362 = vmax.f32 %v345, 0.0
      %v363 = vpack.c.bf16 %v348, %v347
      %v364 = vpack.c.bf16 %v350, %v349
      %v365 = vpack.c.bf16 %v352, %v351
      %v366 = vpack.c.bf16 %v354, %v353
      %v367 = vpack.c.bf16 %v356, %v355
      %v368 = vpack.c.bf16 %v358, %v357
      %v369 = vpack.c.bf16 %v360, %v359
      %v370 = vpack.c.bf16 %v362, %v361
      %v371 = vld [vmem:[%s3] sm:$0xf]
      %v372 = vld [vmem:[%s3 + $0x4] sm:$0xf]
      %v373 = vld [vmem:[%s3 + $0x8] sm:$0xf]
      %v374 = vld [vmem:[%s3 + $0xc] sm:$0xf]
      %v375 = vld [vmem:[%s4] sm:$0x1]
      %v377 = vperm.slane %v375, 0
      %v383 = vunpack.c.l.b16 %v371
      %v384 = vunpack.c.l.b16 %v372
      %v385 = vunpack.c.l.b16 %v373
      %v386 = vunpack.c.l.b16 %v374
      %v387 = vpack.c.b16 %v384, %v383
      %v388 = vpack.c.b16 %v386, %v385
      %v392 = vsel %vm273, %v363, 0
      %v395 = vsel %vm273, %v364, 0
      %v398 = vsel %vm273, %v365, 0
      %v401 = vsel %vm273, %v366, 0
      %v404 = vsel %vm273, %v367, 0
      %v407 = vsel %vm273, %v368, 0
      %v410 = vsel %vm273, %v369, 0
      %v413 = vsel %vm273, %v370, 0
      %415 = vmatpush.bf16.msra.mxu0 0
      %416 = vmatpush.bf16.msra.mxu0 0
      %417 = vmatpush.bf16.msra.mxu0 0
      %418 = vmatpush.bf16.msra.mxu0 0
      %419 = vmatpush.bf16.msra.mxu0 0
      %420 = vmatpush.bf16.msra.mxu0 0
      %421 = vmatpush.bf16.msra.mxu0 %v388
      %422 = vmatpush.bf16.msra.mxu0 %v387
      %423 = vmatmul.bf16.gmra.mxu0 %v392
      %v424 = vpop.f32.mrf.mxu0
      %v425 = vadd.f32 %v377, %v424
      %v426 = vpop.f32.mrf.mxu0
      %v427 = vadd.f32 %v377, %v426
      %428 = vmatmul.bf16.gmra.mxu0 %v395
      %v429 = vpop.f32.mrf.mxu0
      %v430 = vadd.f32 %v377, %v429
      %v431 = vpop.f32.mrf.mxu0
      %v432 = vadd.f32 %v377, %v431
      %433 = vmatmul.bf16.gmra.mxu0 %v398
      %v434 = vpop.f32.mrf.mxu0
      %v435 = vadd.f32 %v377, %v434
      %v436 = vpop.f32.mrf.mxu0
      %v437 = vadd.f32 %v377, %v436
      %438 = vmatmul.bf16.gmra.mxu0 %v401
      %v439 = vpop.f32.mrf.mxu0
      %v440 = vadd.f32 %v377, %v439
      %v441 = vpop.f32.mrf.mxu0
      %v442 = vadd.f32 %v377, %v441
      %443 = vmatmul.bf16.gmra.mxu0 %v404
      %v444 = vpop.f32.mrf.mxu0
      %v445 = vadd.f32 %v377, %v444
      %v446 = vpop.f32.mrf.mxu0
      %v447 = vadd.f32 %v377, %v446
      %448 = vmatmul.bf16.gmra.mxu0 %v407
      %v449 = vpop.f32.mrf.mxu0
      %v450 = vadd.f32 %v377, %v449
      %v451 = vpop.f32.mrf.mxu0
      %v452 = vadd.f32 %v377, %v451
      %453 = vmatmul.bf16.gmra.mxu0 %v410
      %v454 = vpop.f32.mrf.mxu0
      %v455 = vadd.f32 %v377, %v454
      %v456 = vpop.f32.mrf.mxu0
      %v457 = vadd.f32 %v377, %v456
      %458 = vmatmul.bf16.gmra.mxu0 %v413
      %v459 = vpop.f32.mrf.mxu0
      %v460 = vadd.f32 %v377, %v459
      %v461 = vpop.f32.mrf.mxu0
      %v462 = vadd.f32 %v377, %v461
      %463 = vdwg.mxu0
      %vm464 = vcmask 130048
      %v465 = vsel %vm464, %v425, -inf
      %466 = vmax.xlane.f32.xlu0 %v465
      %v467 = vpop.xlane.xlu0 %466
      %v468 = vsel %vm464, %v427, -inf
      %469 = vmax.xlane.f32.xlu0 %v468
      %v470 = vpop.xlane.xlu0 %469
      %v471 = vsel %vm464, %v430, -inf
      %472 = vmax.xlane.f32.xlu0 %v471
      %v473 = vpop.xlane.xlu0 %472
      %v474 = vsel %vm464, %v432, -inf
      %475 = vmax.xlane.f32.xlu0 %v474
      %v476 = vpop.xlane.xlu0 %475
      %v477 = vsel %vm464, %v435, -inf
      %478 = vmax.xlane.f32.xlu0 %v477
      %v479 = vpop.xlane.xlu0 %478
      %v480 = vsel %vm464, %v437, -inf
      %481 = vmax.xlane.f32.xlu0 %v480
      %v482 = vpop.xlane.xlu0 %481
      %v483 = vsel %vm464, %v440, -inf
      %484 = vmax.xlane.f32.xlu0 %v483
      %v485 = vpop.xlane.xlu0 %484
      %v486 = vsel %vm464, %v442, -inf
      %487 = vmax.xlane.f32.xlu0 %v486
      %v488 = vpop.xlane.xlu0 %487
      %v489 = vsel %vm464, %v445, -inf
      %490 = vmax.xlane.f32.xlu0 %v489
      %v491 = vpop.xlane.xlu0 %490
      %v492 = vsel %vm464, %v447, -inf
      %493 = vmax.xlane.f32.xlu0 %v492
      %v494 = vpop.xlane.xlu0 %493
      %v495 = vsel %vm464, %v450, -inf
      %496 = vmax.xlane.f32.xlu0 %v495
      %v497 = vpop.xlane.xlu0 %496
      %v498 = vsel %vm464, %v452, -inf
      %499 = vmax.xlane.f32.xlu0 %v498
      %v500 = vpop.xlane.xlu0 %499
      %v501 = vsel %vm464, %v455, -inf
      %502 = vmax.xlane.f32.xlu0 %v501
      %v503 = vpop.xlane.xlu0 %502
      %v504 = vsel %vm464, %v457, -inf
      %505 = vmax.xlane.f32.xlu0 %v504
      %v506 = vpop.xlane.xlu0 %505
      %v507 = vsel %vm464, %v460, -inf
      %508 = vmax.xlane.f32.xlu0 %v507
      %v509 = vpop.xlane.xlu0 %508
      %v510 = vsel %vm464, %v462, -inf
      %511 = vmax.xlane.f32.xlu0 %v510
      %v512 = vpop.xlane.xlu0 %511
      %v513 = vsub.f32 %v425, %v467
      %v514 = vsub.f32 %v427, %v470
      %v515 = vsub.f32 %v430, %v473
      %v516 = vsub.f32 %v432, %v476
      %v517 = vsub.f32 %v435, %v479
      %v518 = vsub.f32 %v437, %v482
      %v519 = vsub.f32 %v440, %v485
      %v520 = vsub.f32 %v442, %v488
      %v521 = vsub.f32 %v445, %v491
      %v522 = vsub.f32 %v447, %v494
      %v523 = vsub.f32 %v450, %v497
      %v524 = vsub.f32 %v452, %v500
      %v525 = vsub.f32 %v455, %v503
      %v526 = vsub.f32 %v457, %v506
      %v527 = vsub.f32 %v460, %v509
      %v528 = vsub.f32 %v462, %v512
      %v529 = vmul.f32 %v513, 1.442695
      %v530 = vpow.pop %v529
      %v531 = vmul.f32 %v514, 1.442695
      %v532 = vpow.pop %v531
      %v533 = vmul.f32 %v515, 1.442695
      %v534 = vpow.pop %v533
      %v535 = vmul.f32 %v516, 1.442695
      %v536 = vpow.pop %v535
      %v537 = vmul.f32 %v517, 1.442695
      %v538 = vpow.pop %v537
      %v539 = vmul.f32 %v518, 1.442695
      %v540 = vpow.pop %v539
      %v541 = vmul.f32 %v519, 1.442695
      %v542 = vpow.pop %v541
      %v543 = vmul.f32 %v520, 1.442695
      %v544 = vpow.pop %v543
      %v545 = vmul.f32 %v521, 1.442695
      %v546 = vpow.pop %v545
      %v547 = vmul.f32 %v522, 1.442695
      %v548 = vpow.pop %v547
      %v549 = vmul.f32 %v523, 1.442695
      %v550 = vpow.pop %v549
      %v551 = vmul.f32 %v524, 1.442695
      %v552 = vpow.pop %v551
      %v553 = vmul.f32 %v525, 1.442695
      %v554 = vpow.pop %v553
      %v555 = vmul.f32 %v526, 1.442695
      %v556 = vpow.pop %v555
      %v557 = vmul.f32 %v527, 1.442695
      %v558 = vpow.pop %v557
      %v559 = vmul.f32 %v528, 1.442695
      %v560 = vpow.pop %v559
      %v561 = vsel %vm464, %v530, 0.0
      %562 = vadd.xlane.f32.xlu0 %v561
      %v563 = vpop.xlane.xlu0 %562
      %v564 = vsel %vm464, %v532, 0.0
      %565 = vadd.xlane.f32.xlu0 %v564
      %v566 = vpop.xlane.xlu0 %565
      %v567 = vsel %vm464, %v534, 0.0
      %568 = vadd.xlane.f32.xlu0 %v567
      %v569 = vpop.xlane.xlu0 %568
      %v570 = vsel %vm464, %v536, 0.0
      %571 = vadd.xlane.f32.xlu0 %v570
      %v572 = vpop.xlane.xlu0 %571
      %v573 = vsel %vm464, %v538, 0.0
      %574 = vadd.xlane.f32.xlu0 %v573
      %v575 = vpop.xlane.xlu0 %574
      %v576 = vsel %vm464, %v540, 0.0
      %577 = vadd.xlane.f32.xlu0 %v576
      %v578 = vpop.xlane.xlu0 %577
      %v579 = vsel %vm464, %v542, 0.0
      %580 = vadd.xlane.f32.xlu0 %v579
      %v581 = vpop.xlane.xlu0 %580
      %v582 = vsel %vm464, %v544, 0.0
      %583 = vadd.xlane.f32.xlu0 %v582
      %v584 = vpop.xlane.xlu0 %583
      %v585 = vsel %vm464, %v546, 0.0
      %586 = vadd.xlane.f32.xlu0 %v585
      %v587 = vpop.xlane.xlu0 %586
      %v588 = vsel %vm464, %v548, 0.0
      %589 = vadd.xlane.f32.xlu0 %v588
      %v590 = vpop.xlane.xlu0 %589
      %v591 = vsel %vm464, %v550, 0.0
      %592 = vadd.xlane.f32.xlu0 %v591
      %v593 = vpop.xlane.xlu0 %592
      %v594 = vsel %vm464, %v552, 0.0
      %595 = vadd.xlane.f32.xlu0 %v594
      %v596 = vpop.xlane.xlu0 %595
      %v597 = vsel %vm464, %v554, 0.0
      %598 = vadd.xlane.f32.xlu0 %v597
      %v599 = vpop.xlane.xlu0 %598
      %v600 = vsel %vm464, %v556, 0.0
      %601 = vadd.xlane.f32.xlu0 %v600
      %v602 = vpop.xlane.xlu0 %601
      %v603 = vsel %vm464, %v558, 0.0
      %604 = vadd.xlane.f32.xlu0 %v603
      %v605 = vpop.xlane.xlu0 %604
      %v606 = vsel %vm464, %v560, 0.0
      %607 = vadd.xlane.f32.xlu0 %v606
      %v608 = vpop.xlane.xlu0 %607
      %v609 = vlog2.pop %v563
      %v610 = vmul.f32 %v609, 0.6931472
      %v611 = vlog2.pop %v566
      %v612 = vmul.f32 %v611, 0.6931472
      %v613 = vlog2.pop %v569
      %v614 = vmul.f32 %v613, 0.6931472
      %v615 = vlog2.pop %v572
      %v616 = vmul.f32 %v615, 0.6931472
      %v617 = vlog2.pop %v575
      %v618 = vmul.f32 %v617, 0.6931472
      %v619 = vlog2.pop %v578
      %v620 = vmul.f32 %v619, 0.6931472
      %v621 = vlog2.pop %v581
      %v622 = vmul.f32 %v621, 0.6931472
      %v623 = vlog2.pop %v584
      %v624 = vmul.f32 %v623, 0.6931472
      %v625 = vlog2.pop %v587
      %v626 = vmul.f32 %v625, 0.6931472
      %v627 = vlog2.pop %v590
      %v628 = vmul.f32 %v627, 0.6931472
      %v629 = vlog2.pop %v593
      %v630 = vmul.f32 %v629, 0.6931472
      %v631 = vlog2.pop %v596
      %v632 = vmul.f32 %v631, 0.6931472
      %v633 = vlog2.pop %v599
      %v634 = vmul.f32 %v633, 0.6931472
      %v635 = vlog2.pop %v602
      %v636 = vmul.f32 %v635, 0.6931472
      %v637 = vlog2.pop %v605
      %v638 = vmul.f32 %v637, 0.6931472
      %v639 = vlog2.pop %v608
      %v640 = vmul.f32 %v639, 0.6931472
      %v641 = vsub.f32 %v513, %v610
      %v642 = vsub.f32 %v514, %v612
      %v643 = vsub.f32 %v515, %v614
      %v644 = vsub.f32 %v516, %v616
      %v645 = vsub.f32 %v517, %v618
      %v646 = vsub.f32 %v518, %v620
      %v647 = vsub.f32 %v519, %v622
      %v648 = vsub.f32 %v520, %v624
      %v649 = vsub.f32 %v521, %v626
      %v650 = vsub.f32 %v522, %v628
      %v651 = vsub.f32 %v523, %v630
      %v652 = vsub.f32 %v524, %v632
      %v653 = vsub.f32 %v525, %v634
      %v654 = vsub.f32 %v526, %v636
      %v655 = vsub.f32 %v527, %v638
      %v656 = vsub.f32 %v528, %v640
      %657 = vst.msk [vmem:[%s226] sm:$0xff] %vm464, %v641
      %658 = vst.msk [vmem:[%s226 + $0x8] sm:$0xff] %vm464, %v642
      %659 = vst.msk [vmem:[%s226 + $0x10] sm:$0xff] %vm464, %v643
      %660 = vst.msk [vmem:[%s226 + $0x18] sm:$0xff] %vm464, %v644
      %661 = vst.msk [vmem:[%s226 + $0x20] sm:$0xff] %vm464, %v645
      %662 = vst.msk [vmem:[%s226 + $0x28] sm:$0xff] %vm464, %v646
      %663 = vst.msk [vmem:[%s226 + $0x30] sm:$0xff] %vm464, %v647
      %664 = vst.msk [vmem:[%s226 + $0x38] sm:$0xff] %vm464, %v648
      %665 = vst.msk [vmem:[%s226 + $0x40] sm:$0xff] %vm464, %v649
      %666 = vst.msk [vmem:[%s226 + $0x48] sm:$0xff] %vm464, %v650
      %667 = vst.msk [vmem:[%s226 + $0x50] sm:$0xff] %vm464, %v651
      %668 = vst.msk [vmem:[%s226 + $0x58] sm:$0xff] %vm464, %v652
      %669 = vst.msk [vmem:[%s226 + $0x60] sm:$0xff] %vm464, %v653
      %670 = vst.msk [vmem:[%s226 + $0x68] sm:$0xff] %vm464, %v654
      %671 = vst.msk [vmem:[%s226 + $0x70] sm:$0xff] %vm464, %v655
      %672 = vst.msk [vmem:[%s226 + $0x78] sm:$0xff] %vm464, %v656
      %s673 = smul.u32 16, %s16
      %p674 = scmp.lt.s32.totalorder %s673, 31
      %s675 = scalar_select %p674, %s673, 31
      %s676 = smul.addr %s675, 8
      %s677 = scalar_lea.vmem %s5, %s676
      // Predicated region
      $region41: #{mlp_forward.1} parent=39 // pred_check
        %p678 = pneg %p144
      $region42: #{mlp_forward.1} parent=39 // pred_check_branch
        %680 = sbr.rel (%p678) target = $region44
      $region43: #{mlp_forward.1} parent=39 // pred_region
        %s681 = smul.u32 16, %s16
      $region44: #{mlp_forward.1} parent=39 // pred_fallthru
        _
    $region40: #{mlp_forward.1} parent=5 // pred_fallthru
      _
    %p682 = scmp.le.s32.totalorder 2, %s11
    // Predicated region
    $region45: #{mlp_forward.1} parent=5 // pred_check
      %p683 = pneg %p682
    $region46: #{mlp_forward.1} parent=5 // pred_check_branch
      %685 = sbr.rel (%p683) target = $region48
    $region47: #{mlp_forward.1} parent=5 // pred_region
      %s686 = ssub.s32 %s11, 2
      // Predicated region
      $region49: #{mlp_forward.1} parent=47 // pred_check
        %p687 = pneg %p150
      $region50: #{mlp_forward.1} parent=47 // pred_check_branch
        %689 = sbr.rel (%p687) target = $region52
      $region51: #{mlp_forward.1} parent=47 // pred_region
        %s690 = smul.u32 16, %s17
        %p691 = scmp.lt.s32.totalorder %s690, 31
        %s692 = scalar_select %p691, %s690, 31
        %s693 = smul.addr %s692, 8
        %s694 = scalar_lea.vmem %s5, %s693
      $region52: #{mlp_forward.1} parent=47 // pred_fallthru
        _
    $region48: #{mlp_forward.1} parent=5 // pred_fallthru
      _
  $region6: #{mlp_forward.1} parent=0 // loop_footer
    %s15 = sadd.s32 1, %s11
  $region7: #{mlp_forward.1} parent=0 // loop_footer_branch
    %10 = sbr.rel target = $region3
  $region8: #{mlp_forward.1} parent=0 // loop_exit
    _

</llo_original>
